<compile_context>
chip_gen: v5e
topology: v5e:2x2
jax: 0.10.0
libtpu: 0.0.40
codegen_flags: <defaults>
</compile_context>

<pallas_src>
import jax
import jax.numpy as jnp
from jax.experimental import pallas as pl
from jax.experimental.pallas import tpu as pltpu

PAD = 128  # lane width used for hidden activations / weight slabs


def _round_up(x, m):
    return (x + m - 1) // m * m


def actor_net_kernel(x_ref, w1_ref, w_ref, b_ref, out_ref):
    """One batch tile of the 4-layer MLP + masked stable softmax.

    x_ref   : (TILE_B, NS8)   f32  state; lanes >= n_states are zero
    w1_ref  : (NS8, 128)      bf16 layer-1 weight, zero-padded
    w_ref   : (3, 128, 128)   bf16 layer-2..4 weights, zero-padded
    b_ref   : (4, 1, 128)     f32  biases; b_ref[3] carries -1e30 in lanes >= n_actions
    out_ref : (TILE_B, 128)   f32  softmax probs in lanes [0, n_actions), zeros elsewhere
    """
    x = x_ref[...].astype(jnp.bfloat16)  # bf16 only at the MXU operands
    h = jnp.tanh(jnp.dot(x, w1_ref[...],
                         preferred_element_type=jnp.float32) + b_ref[0])
    h = jnp.tanh(jnp.dot(h.astype(jnp.bfloat16), w_ref[0],
                         preferred_element_type=jnp.float32) + b_ref[1])
    h = jnp.tanh(jnp.dot(h.astype(jnp.bfloat16), w_ref[1],
                         preferred_element_type=jnp.float32) + b_ref[2])
    logits = jnp.dot(h.astype(jnp.bfloat16), w_ref[2],
                     preferred_element_type=jnp.float32) + b_ref[3]

    # Padded action lanes carry the baked-in -1e30 bias -> exp underflows to 0,
    # so they contribute nothing to the softmax sum.
    m = jnp.max(logits, axis=-1, keepdims=True)
    e = jnp.exp(logits - m)
    out_ref[...] = e / jnp.sum(e, axis=-1, keepdims=True)  # exact normalization


def pack_actor_params(params, n_states, n_actions):
    """Pack params into three padded slabs:
       w1_pad   (NS8, 128)    bf16
       packed_w (3, 128, 128) bf16   (layers 2..4)
       packed_b (4, 1, 128)   f32    (layer-4 bias carries the action mask)
    """
    (w1, b1), (w2, b2), (w3, b3), (w4, b4) = params
    ns8 = _round_up(n_states, 8)

    w1_pad = jnp.zeros((ns8, PAD), jnp.bfloat16).at[:n_states, :16].set(
        w1.astype(jnp.bfloat16))

    packed_w = jnp.zeros((3, PAD, PAD), jnp.bfloat16)
    for i, (w, (fi, fo)) in enumerate(
            zip([w2, w3, w4], [(16, 32), (32, 16), (16, n_actions)])):
        packed_w = packed_w.at[i, :fi, :fo].set(w.astype(jnp.bfloat16))

    packed_b = jnp.zeros((4, 1, PAD), jnp.float32)
    for i, (b, fo) in enumerate(zip([b1, b2, b3, b4], [16, 32, 16, n_actions])):
        packed_b = packed_b.at[i, 0, :fo].set(b.reshape(-1).astype(jnp.float32))
    # Bake the softmax mask into the final bias: padded w4 columns are zero, so
    # the padded-lane logits equal this large finite negative value exactly.
    packed_b = packed_b.at[3, 0, n_actions:].set(-1e30)
    return w1_pad, packed_w, packed_b


def actor_net_forward(state, w1_pad, packed_w, packed_b, n_actions, tile_b=1024):
    """state (B, n_states) f32 -> action_probs (B, n_actions) f32."""
    batch, n_states = state.shape
    ns8 = w1_pad.shape[0]

    # Sublane-aligned batch tiling; tiny batches collapse to one grid step.
    b_req = _round_up(batch, 8)
    tile_b = min(tile_b, b_req)
    if b_req >= 16:
        # Guarantee >= 2 grid steps so the "parallel" batch axis can shard
        # across both TensorCores on v7x (harmless on v5e/v6e).
        tile_b = min(tile_b, _round_up((b_req + 1) // 2, 8))
    b_pad = _round_up(b_req, tile_b)
    grid = (b_pad // tile_b,)

    # Narrow input slab: only pad when shapes require it (no 128-lane re-pad).
    if batch == b_pad and n_states == ns8:
        x = state.astype(jnp.float32)
    else:
        x = jnp.zeros((b_pad, ns8), jnp.float32).at[:batch, :n_states].set(
            state.astype(jnp.float32))

    out = pl.pallas_call(
        actor_net_kernel,
        out_shape=jax.ShapeDtypeStruct((b_pad, PAD), jnp.float32),
        grid=grid,
        in_specs=[
            pl.BlockSpec((tile_b, ns8), lambda i: (i, 0)),        # state tile
            pl.BlockSpec((ns8, PAD), lambda i: (0, 0)),           # layer-1 W (resident)
            pl.BlockSpec((3, PAD, PAD), lambda i: (0, 0, 0)),     # layer-2..4 W (resident)
            pl.BlockSpec((4, 1, PAD), lambda i: (0, 0, 0)),       # biases (resident)
        ],
        out_specs=pl.BlockSpec((tile_b, PAD), lambda i: (i, 0)),  # lane-dense output
        compiler_params=pltpu.CompilerParams(
            dimension_semantics=("parallel",),
        ),
        cost_estimate=pl.CostEstimate(
            flops=2 * b_pad * (ns8 + 3 * PAD) * PAD,
            transcendentals=4 * b_pad * PAD,                 # 3x tanh + 1x exp
            bytes_accessed=(4 * b_pad * ns8                  # f32 input
                            + 2 * (ns8 + 3 * PAD) * PAD      # bf16 weights
                            + 4 * 4 * PAD                    # f32 biases
                            + 4 * b_pad * PAD),              # f32 output
        ),
    )(x, w1_pad, packed_w, packed_b)

    return out[:batch, :n_actions]


def init_actor_params(key, n_states, n_actions):
    """Deterministic synthetic init. Weights stored as (in, out); biases as (1, out)."""
    sizes = [(n_states, 16), (16, 32), (32, 16), (16, n_actions)]
    params = []
    for i, (fan_in, fan_out) in enumerate(sizes):
        kw, kb, key = jax.random.split(jax.random.fold_in(key, i), 3)
        bound = 1.0 / jnp.sqrt(jnp.float32(fan_in))   # nn.Linear default init range
        w = jax.random.uniform(kw, (fan_in, fan_out), jnp.float32, -bound, bound)
        b = jax.random.uniform(kb, (1, fan_out), jnp.float32, -bound, bound)
        params.append((w, b))
    return params


if __name__ == "__main__":
    n_states, n_actions = 4, 2          # CartPole-v1 dims
    batch = 8

    key = jax.random.PRNGKey(0)
    k_params, k_state = jax.random.split(key)
    params = init_actor_params(k_params, n_states, n_actions)
    state = jax.random.normal(k_state, (batch, n_states), jnp.float32)

    w1_pad, packed_w, packed_b = pack_actor_params(params, n_states, n_actions)
    probs = jax.block_until_ready(
        actor_net_forward(state, w1_pad, packed_w, packed_b, n_actions))

    # Reference in plain JAX (f32 throughout, matches the PyTorch module).
    def ref(x, params):
        (w1, b1), (w2, b2), (w3, b3), (w4, b4) = params
        h = jnp.tanh(x @ w1 + b1)
        h = jnp.tanh(h @ w2 + b2)
        h = jnp.tanh(h @ w3 + b3)
        return jax.nn.softmax(h @ w4 + b4, axis=-1)

    expected = ref(state, params)
    assert probs.shape == (batch, n_actions)
    # bf16 MXU operands -> compare at bf16-level tolerance against the f32 reference.
    assert jnp.allclose(probs, expected, atol=2e-2, rtol=2e-2)
    # Exact divide in the softmax -> rows sum to 1 to f32 rounding.
    assert jnp.allclose(jnp.sum(probs, axis=-1), 1.0, atol=1e-4)

    print("KERNEL_OK")
</pallas_src>

<mosaic_0001>
module attributes {stable_mosaic.version = 11 : i64} {
  func.func @actor_net_kernel(%arg0: i32, %arg1: memref<8x8xf32, #tpu.memory_space<vmem>>, %arg2: memref<8x128xbf16, #tpu.memory_space<vmem>>, %arg3: memref<3x128x128xbf16, #tpu.memory_space<vmem>>, %arg4: memref<4x1x128xf32, #tpu.memory_space<vmem>>, %arg5: memref<8x128xf32, #tpu.memory_space<vmem>>) attributes {dimension_semantics = [#tpu.dimension_semantics<parallel>], iteration_bounds = array<i64: 1>, scalar_prefetch = 0 : i64, scratch_operands = 0 : i64, tpu.core_type = #tpu.core_type<tc>, window_params = [{transform_indices = @transform_0, window_bounds = array<i64: 8, 8>}, {pipeline_mode = #tpu.pipeline_mode<synchronous>, transform_indices = @transform_1, window_bounds = array<i64: 8, 128>}, {pipeline_mode = #tpu.pipeline_mode<synchronous>, transform_indices = @transform_2, window_bounds = array<i64: 3, 128, 128>}, {pipeline_mode = #tpu.pipeline_mode<synchronous>, transform_indices = @transform_3, window_bounds = array<i64: 4, 1, 128>}, {transform_indices = @transform_4, window_bounds = array<i64: 8, 128>}]} {
    %c0 = arith.constant 0 : index
    %c0_0 = arith.constant 0 : index
    %0 = vector.load %arg1[%c0, %c0_0] : memref<8x8xf32, #tpu.memory_space<vmem>>, vector<8x8xf32>
    %1 = arith.truncf %0 : vector<8x8xf32> to vector<8x8xbf16>
    %c0_1 = arith.constant 0 : index
    %c0_2 = arith.constant 0 : index
    %2 = vector.load %arg2[%c0_1, %c0_2] : memref<8x128xbf16, #tpu.memory_space<vmem>>, vector<8x128xbf16>
    %cst = arith.constant dense<0.000000e+00> : vector<8x128xf32>
    %3 = tpu.matmul %1, %2, %cst {dimension_numbers = #tpu.dot_dimension_numbers<[1], [0], [0], [1], [0, 0, 1, 1], [], []>} : vector<8x8xbf16>, vector<8x128xbf16>, vector<8x128xf32> -> vector<8x128xf32>
    %c0_3 = arith.constant 0 : index
    %c0_4 = arith.constant 0 : index
    %c0_5 = arith.constant 0 : index
    %4 = vector.load %arg4[%c0_3, %c0_4, %c0_5] : memref<4x1x128xf32, #tpu.memory_space<vmem>>, vector<1x1x128xf32>
    %5 = vector.shape_cast %4 : vector<1x1x128xf32> to vector<1x128xf32>
    %6 = vector.broadcast %5 : vector<1x128xf32> to vector<8x128xf32>
    %7 = arith.addf %3, %6 : vector<8x128xf32>
    %8 = math.tanh %7 : vector<8x128xf32>
    %9 = arith.truncf %8 : vector<8x128xf32> to vector<8x128xbf16>
    %c0_6 = arith.constant 0 : index
    %c0_7 = arith.constant 0 : index
    %c0_8 = arith.constant 0 : index
    %10 = vector.load %arg3[%c0_6, %c0_7, %c0_8] : memref<3x128x128xbf16, #tpu.memory_space<vmem>>, vector<1x128x128xbf16>
    %11 = vector.shape_cast %10 : vector<1x128x128xbf16> to vector<128x128xbf16>
    %cst_9 = arith.constant dense<0.000000e+00> : vector<8x128xf32>
    %12 = tpu.matmul %9, %11, %cst_9 {dimension_numbers = #tpu.dot_dimension_numbers<[1], [0], [0], [1], [0, 0, 1, 1], [], []>} : vector<8x128xbf16>, vector<128x128xbf16>, vector<8x128xf32> -> vector<8x128xf32>
    %c1 = arith.constant 1 : index
    %c0_10 = arith.constant 0 : index
    %c0_11 = arith.constant 0 : index
    %13 = vector.load %arg4[%c1, %c0_10, %c0_11] : memref<4x1x128xf32, #tpu.memory_space<vmem>>, vector<1x1x128xf32>
    %14 = vector.shape_cast %13 : vector<1x1x128xf32> to vector<1x128xf32>
    %15 = vector.broadcast %14 : vector<1x128xf32> to vector<8x128xf32>
    %16 = arith.addf %12, %15 : vector<8x128xf32>
    %17 = math.tanh %16 : vector<8x128xf32>
    %18 = arith.truncf %17 : vector<8x128xf32> to vector<8x128xbf16>
    %c1_12 = arith.constant 1 : index
    %c0_13 = arith.constant 0 : index
    %c0_14 = arith.constant 0 : index
    %19 = vector.load %arg3[%c1_12, %c0_13, %c0_14] : memref<3x128x128xbf16, #tpu.memory_space<vmem>>, vector<1x128x128xbf16>
    %20 = vector.shape_cast %19 : vector<1x128x128xbf16> to vector<128x128xbf16>
    %cst_15 = arith.constant dense<0.000000e+00> : vector<8x128xf32>
    %21 = tpu.matmul %18, %20, %cst_15 {dimension_numbers = #tpu.dot_dimension_numbers<[1], [0], [0], [1], [0, 0, 1, 1], [], []>} : vector<8x128xbf16>, vector<128x128xbf16>, vector<8x128xf32> -> vector<8x128xf32>
    %c2 = arith.constant 2 : index
    %c0_16 = arith.constant 0 : index
    %c0_17 = arith.constant 0 : index
    %22 = vector.load %arg4[%c2, %c0_16, %c0_17] : memref<4x1x128xf32, #tpu.memory_space<vmem>>, vector<1x1x128xf32>
    %23 = vector.shape_cast %22 : vector<1x1x128xf32> to vector<1x128xf32>
    %24 = vector.broadcast %23 : vector<1x128xf32> to vector<8x128xf32>
    %25 = arith.addf %21, %24 : vector<8x128xf32>
    %26 = math.tanh %25 : vector<8x128xf32>
    %27 = arith.truncf %26 : vector<8x128xf32> to vector<8x128xbf16>
    %c2_18 = arith.constant 2 : index
    %c0_19 = arith.constant 0 : index
    %c0_20 = arith.constant 0 : index
    %28 = vector.load %arg3[%c2_18, %c0_19, %c0_20] : memref<3x128x128xbf16, #tpu.memory_space<vmem>>, vector<1x128x128xbf16>
    %29 = vector.shape_cast %28 : vector<1x128x128xbf16> to vector<128x128xbf16>
    %cst_21 = arith.constant dense<0.000000e+00> : vector<8x128xf32>
    %30 = tpu.matmul %27, %29, %cst_21 {dimension_numbers = #tpu.dot_dimension_numbers<[1], [0], [0], [1], [0, 0, 1, 1], [], []>} : vector<8x128xbf16>, vector<128x128xbf16>, vector<8x128xf32> -> vector<8x128xf32>
    %c3 = arith.constant 3 : index
    %c0_22 = arith.constant 0 : index
    %c0_23 = arith.constant 0 : index
    %31 = vector.load %arg4[%c3, %c0_22, %c0_23] : memref<4x1x128xf32, #tpu.memory_space<vmem>>, vector<1x1x128xf32>
    %32 = vector.shape_cast %31 : vector<1x1x128xf32> to vector<1x128xf32>
    %33 = vector.broadcast %32 : vector<1x128xf32> to vector<8x128xf32>
    %34 = arith.addf %30, %33 : vector<8x128xf32>
    %cst_24 = arith.constant dense<0xFF800000> : vector<8xf32>
    %35 = vector.multi_reduction <maximumf>, %34, %cst_24 [1] : vector<8x128xf32> to vector<8xf32>
    %36 = vector.shape_cast %35 : vector<8xf32> to vector<8x1xf32>
    %37 = vector.broadcast %36 : vector<8x1xf32> to vector<8x128xf32>
    %38 = arith.subf %34, %37 : vector<8x128xf32>
    %39 = math.exp %38 : vector<8x128xf32>
    %cst_25 = arith.constant dense<0.000000e+00> : vector<8xf32>
    %40 = vector.multi_reduction <add>, %39, %cst_25 [1] : vector<8x128xf32> to vector<8xf32>
    %41 = vector.shape_cast %40 : vector<8xf32> to vector<8x1xf32>
    %42 = vector.broadcast %41 : vector<8x1xf32> to vector<8x128xf32>
    %43 = arith.divf %39, %42 : vector<8x128xf32>
    %c0_26 = arith.constant 0 : index
    %c0_27 = arith.constant 0 : index
    %44 = vector.load %arg5[%c0_26, %c0_27] : memref<8x128xf32, #tpu.memory_space<vmem>>, vector<8x128xf32>
    tpu.vector_store %arg5[%c0_26, %c0_27], %43 {strides = array<i32>} : memref<8x128xf32, #tpu.memory_space<vmem>>, vector<8x128xf32>,
    return
  }
  func.func @transform_0(%arg0: i32) -> (i32, i32) {
    %c0_i32 = arith.constant 0 : i32
    %c0_i32_0 = arith.constant 0 : i32
    return %arg0, %c0_i32 : i32, i32
  }
  func.func @transform_1(%arg0: i32) -> (i32, i32) {
    %c0_i32 = arith.constant 0 : i32
    %c0_i32_0 = arith.constant 0 : i32
    %c0_i32_1 = arith.constant 0 : i32
    return %c0_i32, %c0_i32_0 : i32, i32
  }
  func.func @transform_2(%arg0: i32) -> (i32, i32, i32) {
    %c0_i32 = arith.constant 0 : i32
    %c0_i32_0 = arith.constant 0 : i32
    %c0_i32_1 = arith.constant 0 : i32
    %c0_i32_2 = arith.constant 0 : i32
    return %c0_i32, %c0_i32_0, %c0_i32_1 : i32, i32, i32
  }
  func.func @transform_3(%arg0: i32) -> (i32, i32, i32) {
    %c0_i32 = arith.constant 0 : i32
    %c0_i32_0 = arith.constant 0 : i32
    %c0_i32_1 = arith.constant 0 : i32
    %c0_i32_2 = arith.constant 0 : i32
    return %c0_i32, %c0_i32_0, %c0_i32_1 : i32, i32, i32
  }
  func.func @transform_4(%arg0: i32) -> (i32, i32) {
    %c0_i32 = arith.constant 0 : i32
    %c0_i32_0 = arith.constant 0 : i32
    return %arg0, %c0_i32 : i32, i32
  }
}

</mosaic_0001>

<llo_original>
// kernel: tpu_custom_call.1
$region0: #{tpu_custom_call.1}
  #allocation0 [shape = 'u32[]', space=smem, size = 0x4, offset = 0x4, fixed_abs, tag = 'smem constant byte address 0x4 - core index']
  #allocation1 [shape = 'u32[72,128]{1,0:T(1,128)}', space=vmem, size = 0x9000, scoped, tag = 'internal scratch']
  %s0 = inlined_call_operand.hbm [shape: f32[8,8], index: 0, kind: input, shape index: {}]
  %s1 = inlined_call_operand.hbm [shape: bf16[8,128], index: 1, kind: input, shape index: {}]
  %s2 = inlined_call_operand.hbm [shape: bf16[3,128,128], index: 2, kind: input, shape index: {}]
  %s3 = inlined_call_operand.hbm [shape: f32[4,1,128], index: 3, kind: input, shape index: {}]
  %s4 = inlined_call_operand.hbm [shape: f32[8,128], index: 4, kind: output, shape index: {}]
  %s5 = sld [smem:[#allocation0]]
  $region42: #{tpu_custom_call.1} parent=0
    _
  %s7 = ssub.s32 1, %s5
  %s8 = scalar_select 0, %s7, %s5
  $region1: #{tpu_custom_call.1} parent=0
    #allocation2 [shape = 'u8[4096]{0}', space=vmem, size = 0x1000, scoped, tag = 'input window, operand 0, single buffered']
    #allocation3 [shape = 's32[1]{0}', space=sflag, size = 0x4, scoped, tag = 'scoped memory for tpu_custom_call.1']
    #allocation4 [shape = 's32[1]{0}', space=sflag, size = 0x4, scoped, tag = 'scoped memory for tpu_custom_call.1']
    #allocation5 [shape = 'u8[2048]{0}', space=vmem, size = 0x800, scoped, tag = 'input window, operand 1, single buffered']
    #allocation6 [shape = 's32[1]{0}', space=sflag, size = 0x4, scoped, tag = 'scoped memory for tpu_custom_call.1']
    #allocation7 [shape = 'u8[98304]{0}', space=vmem, size = 0x18000, scoped, tag = 'input window, operand 2, single buffered']
    #allocation8 [shape = 'u8[2048]{0}', space=vmem, size = 0x800, scoped, tag = 'input window, operand 3, single buffered']
    #allocation9 [shape = 's32[1]{0}', space=sflag, size = 0x4, scoped, tag = 'scoped memory for tpu_custom_call.1']
    #allocation10 [shape = 'u8[4096]{0}', space=vmem, size = 0x1000, scoped, tag = 'output window, operand 0, single buffered']
    %9 = vsyncpa [#allocation3], 0
    %10 = vsyncpa [#allocation6], 0
    %11 = vsyncpa [#allocation9], 0
    %12 = vsyncpa [#allocation4], 0
    // Predicated region
    $region2: #{tpu_custom_call.1} parent=1 // pred_check
      _
    $region3: #{tpu_custom_call.1} parent=1 // pred_check_branch
      %14 = sbr.rel (0) target = $region5
    $region4: #{tpu_custom_call.1} parent=1 // pred_region
      %16 = vsyncadd [#allocation3], 0
      %s18 = sshll.u32 %s0, 4
      %s19 = int_to_ptr.hbm [resolvable:$true] %s18
      %s20 = sshll.u32 [#allocation2], 4
      %s21 = int_to_ptr.vmem [resolvable:$true] %s20
      %23 = dma.hbm_to_vmem [thread:$0]  %s19, 128, %s21, [#allocation3]
    $region5: #{tpu_custom_call.1} parent=1 // pred_fallthru
      _
    // Predicated region
    $region6: #{tpu_custom_call.1} parent=1 // pred_check
      _
    $region7: #{tpu_custom_call.1} parent=1 // pred_check_branch
      %25 = sbr.rel (0) target = $region9
    $region8: #{tpu_custom_call.1} parent=1 // pred_region
      %27 = vsyncadd [#allocation6], 0
      %s29 = sshll.u32 %s1, 4
      %s30 = int_to_ptr.hbm [resolvable:$true] %s29
      %s31 = sshll.u32 [#allocation5], 4
      %s32 = int_to_ptr.vmem [resolvable:$true] %s31
      %34 = dma.hbm_to_vmem [thread:$0]  %s30, 64, %s32, [#allocation6]
    $region9: #{tpu_custom_call.1} parent=1 // pred_fallthru
      _
    // Predicated region
    $region10: #{tpu_custom_call.1} parent=1 // pred_check
      _
    $region11: #{tpu_custom_call.1} parent=1 // pred_check_branch
      %36 = sbr.rel (0) target = $region13
    $region12: #{tpu_custom_call.1} parent=1 // pred_region
      %38 = vsyncadd [#allocation6], 0
      %s39 = sshll.u32 %s2, 4
      %s40 = int_to_ptr.hbm [resolvable:$true] %s39
      %s41 = sshll.u32 [#allocation7], 4
      %s42 = int_to_ptr.vmem [resolvable:$true] %s41
      %47 = dma.hbm_to_vmem [thread:$0]  %s40, 3072, %s42, [#allocation6], 64, 64, 4
    $region13: #{tpu_custom_call.1} parent=1 // pred_fallthru
      _
    // Predicated region
    $region14: #{tpu_custom_call.1} parent=1 // pred_check
      _
    $region15: #{tpu_custom_call.1} parent=1 // pred_check_branch
      %49 = sbr.rel (0) target = $region17
    $region16: #{tpu_custom_call.1} parent=1 // pred_region
      %51 = vsyncadd [#allocation9], 0
      %s52 = sshll.u32 %s3, 4
      %s53 = int_to_ptr.hbm [resolvable:$true] %s52
      %s54 = sshll.u32 [#allocation8], 4
      %s55 = int_to_ptr.vmem [resolvable:$true] %s54
      %60 = dma.hbm_to_vmem [thread:$0]  %s53, 64, %s55, [#allocation9], 16, 16, 1
    $region17: #{tpu_custom_call.1} parent=1 // pred_fallthru
      _
    // Predicated region
    $region18: #{tpu_custom_call.1} parent=1 // pred_check
      _
    $region19: #{tpu_custom_call.1} parent=1 // pred_check_branch
      %62 = sbr.rel (0) target = $region21
    $region20: #{tpu_custom_call.1} parent=1 // pred_region
      %64 = dma.done [#allocation3], 128
    $region21: #{tpu_custom_call.1} parent=1 // pred_fallthru
      _
    // Predicated region
    $region22: #{tpu_custom_call.1} parent=1 // pred_check
      _
    $region23: #{tpu_custom_call.1} parent=1 // pred_check_branch
      %66 = sbr.rel (0) target = $region25
    $region24: #{tpu_custom_call.1} parent=1 // pred_region
      %68 = dma.done [#allocation6], 64
    $region25: #{tpu_custom_call.1} parent=1 // pred_fallthru
      _
    // Predicated region
    $region26: #{tpu_custom_call.1} parent=1 // pred_check
      _
    $region27: #{tpu_custom_call.1} parent=1 // pred_check_branch
      %70 = sbr.rel (0) target = $region29
    $region28: #{tpu_custom_call.1} parent=1 // pred_region
      %72 = dma.done [#allocation6], 3072
    $region29: #{tpu_custom_call.1} parent=1 // pred_fallthru
      _
    // Predicated region
    $region30: #{tpu_custom_call.1} parent=1 // pred_check
      _
    $region31: #{tpu_custom_call.1} parent=1 // pred_check_branch
      %74 = sbr.rel (0) target = $region33
    $region32: #{tpu_custom_call.1} parent=1 // pred_region
      %76 = dma.done [#allocation9], 64
    $region33: #{tpu_custom_call.1} parent=1 // pred_fallthru
      _
    %v78 = vld [vmem:[#allocation2] sm:$0xff]
    %v79 = vpack.c.bf16 %v78, %v78
    %v80 = vld [vmem:[#allocation5] sm:$0xf]
    %v81 = vld [vmem:[#allocation8] sm:$0x1]
    %v83 = vperm.slane %v81, 0
    %vm85 = vcmask 64512
    %v87 = vsel %vm85, %v79, 0
    %vm89 = vcmask 1043456
    %v91 = vsel %vm89, %v80, 0
    %93 = vmatpush.bf16.msra.mxu0 0
    %94 = vmatpush.bf16.msra.mxu0 0
    %95 = vmatpush.bf16.msra.mxu0 0
    %96 = vmatpush.bf16.msra.mxu0 0
    %97 = vmatpush.bf16.msra.mxu0 0
    %98 = vmatpush.bf16.msra.mxu0 0
    %99 = vmatpush.bf16.msra.mxu0 0
    %100 = vmatpush.bf16.msra.mxu0 %v91
    %101 = vmatmul.bf16.gmra.mxu0 %v87
    %v102 = vpop.f32.mrf.mxu0
    %v103 = vadd.f32 %v83, %v102
    %v104 = vpop.f32.mrf.mxu0
    %105 = vdwg.mxu0
    %v106 = vtanh.pop %v103
    %v107 = vpack.c.bf16 %v106, %v106
    %v108 = vld [vmem:[#allocation7] sm:$0xf]
    %v109 = vld [vmem:[#allocation7 + $0x4] sm:$0xf]
    %v110 = vld [vmem:[#allocation7 + $0x8] sm:$0xf]
    %v111 = vld [vmem:[#allocation7 + $0xc] sm:$0xf]
    %v112 = vld [vmem:[#allocation7 + $0x10] sm:$0xf]
    %v113 = vld [vmem:[#allocation7 + $0x14] sm:$0xf]
    %v114 = vld [vmem:[#allocation7 + $0x18] sm:$0xf]
    %v115 = vld [vmem:[#allocation7 + $0x1c] sm:$0xf]
    %v116 = vld [vmem:[#allocation7 + $0x20] sm:$0xf]
    %v117 = vld [vmem:[#allocation7 + $0x24] sm:$0xf]
    %v118 = vld [vmem:[#allocation7 + $0x28] sm:$0xf]
    %v119 = vld [vmem:[#allocation7 + $0x2c] sm:$0xf]
    %v120 = vld [vmem:[#allocation7 + $0x30] sm:$0xf]
    %v121 = vld [vmem:[#allocation7 + $0x34] sm:$0xf]
    %v122 = vld [vmem:[#allocation7 + $0x38] sm:$0xf]
    %v123 = vld [vmem:[#allocation7 + $0x3c] sm:$0xf]
    %s124 = scalar_lea.vmem [#allocation8], 1
    %v125 = vld [vmem:[%s124] sm:$0x1]
    %v127 = vperm.slane %v125, 0
    %v145 = vunpack.c.l.b16 %v108
    %v146 = vunpack.c.l.b16 %v109
    %v147 = vunpack.c.l.b16 %v110
    %v148 = vunpack.c.l.b16 %v111
    %v149 = vunpack.c.l.b16 %v112
    %v150 = vunpack.c.l.b16 %v113
    %v151 = vunpack.c.l.b16 %v114
    %v152 = vunpack.c.l.b16 %v115
    %v153 = vunpack.c.l.b16 %v116
    %v154 = vunpack.c.l.b16 %v117
    %v155 = vunpack.c.l.b16 %v118
    %v156 = vunpack.c.l.b16 %v119
    %v157 = vunpack.c.l.b16 %v120
    %v158 = vunpack.c.l.b16 %v121
    %v159 = vunpack.c.l.b16 %v122
    %v160 = vunpack.c.l.b16 %v123
    %v161 = vpack.c.b16 %v146, %v145
    %v162 = vpack.c.b16 %v148, %v147
    %v163 = vpack.c.b16 %v150, %v149
    %v164 = vpack.c.b16 %v152, %v151
    %v165 = vpack.c.b16 %v154, %v153
    %v166 = vpack.c.b16 %v156, %v155
    %v167 = vpack.c.b16 %v158, %v157
    %v168 = vpack.c.b16 %v160, %v159
    %177 = vmatpush.bf16.msra.mxu0 %v168
    %178 = vmatpush.bf16.msra.mxu0 %v167
    %179 = vmatpush.bf16.msra.mxu0 %v166
    %180 = vmatpush.bf16.msra.mxu0 %v165
    %181 = vmatpush.bf16.msra.mxu0 %v164
    %182 = vmatpush.bf16.msra.mxu0 %v163
    %183 = vmatpush.bf16.msra.mxu0 %v162
    %184 = vmatpush.bf16.msra.mxu0 %v161
    %185 = vmatmul.bf16.gmra.mxu0 %v107
    %v186 = vpop.f32.mrf.mxu0
    %v187 = vadd.f32 %v127, %v186
    %v188 = vpop.f32.mrf.mxu0
    %189 = vdwg.mxu0
    %v190 = vtanh.pop %v187
    %v191 = vpack.c.bf16 %v190, %v190
    %s192 = scalar_lea.vmem [#allocation7], 64
    %v193 = vld [vmem:[%s192] sm:$0xf]
    %v194 = vld [vmem:[%s192 + $0x4] sm:$0xf]
    %v195 = vld [vmem:[%s192 + $0x8] sm:$0xf]
    %v196 = vld [vmem:[%s192 + $0xc] sm:$0xf]
    %v197 = vld [vmem:[%s192 + $0x10] sm:$0xf]
    %v198 = vld [vmem:[%s192 + $0x14] sm:$0xf]
    %v199 = vld [vmem:[%s192 + $0x18] sm:$0xf]
    %v200 = vld [vmem:[%s192 + $0x1c] sm:$0xf]
    %v201 = vld [vmem:[%s192 + $0x20] sm:$0xf]
    %v202 = vld [vmem:[%s192 + $0x24] sm:$0xf]
    %v203 = vld [vmem:[%s192 + $0x28] sm:$0xf]
    %v204 = vld [vmem:[%s192 + $0x2c] sm:$0xf]
    %v205 = vld [vmem:[%s192 + $0x30] sm:$0xf]
    %v206 = vld [vmem:[%s192 + $0x34] sm:$0xf]
    %v207 = vld [vmem:[%s192 + $0x38] sm:$0xf]
    %v208 = vld [vmem:[%s192 + $0x3c] sm:$0xf]
    %s209 = scalar_lea.vmem [#allocation8], 2
    %v210 = vld [vmem:[%s209] sm:$0x1]
    %v212 = vperm.slane %v210, 0
    %v230 = vunpack.c.l.b16 %v193
    %v231 = vunpack.c.l.b16 %v194
    %v232 = vunpack.c.l.b16 %v195
    %v233 = vunpack.c.l.b16 %v196
    %v234 = vunpack.c.l.b16 %v197
    %v235 = vunpack.c.l.b16 %v198
    %v236 = vunpack.c.l.b16 %v199
    %v237 = vunpack.c.l.b16 %v200
    %v238 = vunpack.c.l.b16 %v201
    %v239 = vunpack.c.l.b16 %v202
    %v240 = vunpack.c.l.b16 %v203
    %v241 = vunpack.c.l.b16 %v204
    %v242 = vunpack.c.l.b16 %v205
    %v243 = vunpack.c.l.b16 %v206
    %v244 = vunpack.c.l.b16 %v207
    %v245 = vunpack.c.l.b16 %v208
    %v246 = vpack.c.b16 %v231, %v230
    %v247 = vpack.c.b16 %v233, %v232
    %v248 = vpack.c.b16 %v235, %v234
    %v249 = vpack.c.b16 %v237, %v236
    %v250 = vpack.c.b16 %v239, %v238
    %v251 = vpack.c.b16 %v241, %v240
    %v252 = vpack.c.b16 %v243, %v242
    %v253 = vpack.c.b16 %v245, %v244
    %262 = vmatpush.bf16.msra.mxu0 %v253
    %263 = vmatpush.bf16.msra.mxu0 %v252
    %264 = vmatpush.bf16.msra.mxu0 %v251
    %265 = vmatpush.bf16.msra.mxu0 %v250
    %266 = vmatpush.bf16.msra.mxu0 %v249
    %267 = vmatpush.bf16.msra.mxu0 %v248
    %268 = vmatpush.bf16.msra.mxu0 %v247
    %269 = vmatpush.bf16.msra.mxu0 %v246
    %270 = vmatmul.bf16.gmra.mxu0 %v191
    %v271 = vpop.f32.mrf.mxu0
    %v272 = vadd.f32 %v212, %v271
    %v273 = vpop.f32.mrf.mxu0
    %274 = vdwg.mxu0
    %v275 = vtanh.pop %v272
    %v276 = vpack.c.bf16 %v275, %v275
    %s277 = scalar_lea.vmem [#allocation7], 128
    %v278 = vld [vmem:[%s277] sm:$0xf]
    %v279 = vld [vmem:[%s277 + $0x4] sm:$0xf]
    %v280 = vld [vmem:[%s277 + $0x8] sm:$0xf]
    %v281 = vld [vmem:[%s277 + $0xc] sm:$0xf]
    %v282 = vld [vmem:[%s277 + $0x10] sm:$0xf]
    %v283 = vld [vmem:[%s277 + $0x14] sm:$0xf]
    %v284 = vld [vmem:[%s277 + $0x18] sm:$0xf]
    %v285 = vld [vmem:[%s277 + $0x1c] sm:$0xf]
    %v286 = vld [vmem:[%s277 + $0x20] sm:$0xf]
    %v287 = vld [vmem:[%s277 + $0x24] sm:$0xf]
    %v288 = vld [vmem:[%s277 + $0x28] sm:$0xf]
    %v289 = vld [vmem:[%s277 + $0x2c] sm:$0xf]
    %v290 = vld [vmem:[%s277 + $0x30] sm:$0xf]
    %v291 = vld [vmem:[%s277 + $0x34] sm:$0xf]
    %v292 = vld [vmem:[%s277 + $0x38] sm:$0xf]
    %v293 = vld [vmem:[%s277 + $0x3c] sm:$0xf]
    %s294 = scalar_lea.vmem [#allocation8], 3
    %v295 = vld [vmem:[%s294] sm:$0x1]
    %v297 = vperm.slane %v295, 0
    %v315 = vunpack.c.l.b16 %v278
    %v316 = vunpack.c.l.b16 %v279
    %v317 = vunpack.c.l.b16 %v280
    %v318 = vunpack.c.l.b16 %v281
    %v319 = vunpack.c.l.b16 %v282
    %v320 = vunpack.c.l.b16 %v283
    %v321 = vunpack.c.l.b16 %v284
    %v322 = vunpack.c.l.b16 %v285
    %v323 = vunpack.c.l.b16 %v286
    %v324 = vunpack.c.l.b16 %v287
    %v325 = vunpack.c.l.b16 %v288
    %v326 = vunpack.c.l.b16 %v289
    %v327 = vunpack.c.l.b16 %v290
    %v328 = vunpack.c.l.b16 %v291
    %v329 = vunpack.c.l.b16 %v292
    %v330 = vunpack.c.l.b16 %v293
    %v331 = vpack.c.b16 %v316, %v315
    %v332 = vpack.c.b16 %v318, %v317
    %v333 = vpack.c.b16 %v320, %v319
    %v334 = vpack.c.b16 %v322, %v321
    %v335 = vpack.c.b16 %v324, %v323
    %v336 = vpack.c.b16 %v326, %v325
    %v337 = vpack.c.b16 %v328, %v327
    %v338 = vpack.c.b16 %v330, %v329
    %347 = vmatpush.bf16.msra.mxu0 %v338
    %348 = vmatpush.bf16.msra.mxu0 %v337
    %349 = vmatpush.bf16.msra.mxu0 %v336
    %350 = vmatpush.bf16.msra.mxu0 %v335
    %351 = vmatpush.bf16.msra.mxu0 %v334
    %352 = vmatpush.bf16.msra.mxu0 %v333
    %353 = vmatpush.bf16.msra.mxu0 %v332
    %354 = vmatpush.bf16.msra.mxu0 %v331
    %355 = vmatmul.bf16.gmra.mxu0 %v276
    %v356 = vpop.f32.mrf.mxu0
    %v357 = vadd.f32 %v297, %v356
    %v358 = vpop.f32.mrf.mxu0
    %359 = vdwg.mxu0
    %360 = vmax.xlane.f32.xlu0 %v357
    %v361 = vpop.xlane.xlu0 %360
    %v362 = vsub.f32 %v357, %v361
    %v363 = vmul.f32 %v362, 1.442695
    %v364 = vpow.pop %v363
    %365 = vadd.xlane.f32.xlu0 %v364
    %v366 = vpop.xlane.xlu0 %365
    %v367 = vrcp.pop %v366
    %v368 = vmul.f32 %v366, %v367
    %v369 = vsub.f32 1.0, %v368
    %v370 = vmul.f32 %v367, %v369
    %v371 = vadd.f32 %v367, %v370
    %vm372 = vweird.f32 %v366
    %vm373 = vweird.f32 %v367
    %vm374 = vmor %vm372, %vm373
    %v375 = vsel %vm374, %v367, %v371
    %v376 = vand.u32 2147483647, %v366
    %vm377 = vcmp.eq.f32.partialorder %v376, 8.507059e+37
    %v378 = vand.u32 %v366, 2147483648
    %v379 = vor.u32 1.1754944e-38, %v378
    %v380 = vsel %vm377, %v379, %v375
    %v381 = vmul.f32 %v364, %v380
    %382 = vst [vmem:[#allocation10] sm:$0xff] %v381
    // Predicated region
    $region34: #{tpu_custom_call.1} parent=1 // pred_check
      _
    $region35: #{tpu_custom_call.1} parent=1 // pred_check_branch
      %384 = sbr.rel (0) target = $region37
    $region36: #{tpu_custom_call.1} parent=1 // pred_region
      %386 = vsyncadd [#allocation4], 0
      %s388 = sshll.u32 [#allocation10], 4
      %s389 = int_to_ptr.vmem [resolvable:$true] %s388
      %s390 = sshll.u32 %s4, 4
      %s391 = int_to_ptr.hbm [resolvable:$true] %s390
      %393 = dma.vmem_to_hbm [thread:$0]  %s389, 128, %s391, [#allocation4]
    $region37: #{tpu_custom_call.1} parent=1 // pred_fallthru
      _
    // Predicated region
    $region38: #{tpu_custom_call.1} parent=1 // pred_check
      _
    $region39: #{tpu_custom_call.1} parent=1 // pred_check_branch
      %395 = sbr.rel (0) target = $region41
    $region40: #{tpu_custom_call.1} parent=1 // pred_region
      %397 = dma.done [#allocation4], 128
    $region41: #{tpu_custom_call.1} parent=1 // pred_fallthru
      _
    %398 = vsyncpa [#allocation3], 1
    %399 = vsyncpa [#allocation6], 1
    %400 = vsyncpa [#allocation9], 1
    %401 = vsyncpa [#allocation4], 1

</llo_original>
